<compile_context>
chip_gen: v6e
topology: v6e:2x2x1
jax: 0.10.0
libtpu: 0.0.40
codegen_flags: <defaults>
</compile_context>

<pallas_src>
import jax
import jax.numpy as jnp
from jax.experimental import pallas as pl
from jax.experimental.pallas import tpu as pltpu

# ---- model config -----------------------------------------------------------
BATCH = 8
INPUT_DIM = 32
HIDDEN_DIM = 32
OUTPUT_DIM = 16
NUM_NETWORKS = 2
DROPOUT_RATE = 0.0                               # identity (eval / rate 0)

LANES = 128
PACKED_HIDDEN = NUM_NETWORKS * HIDDEN_DIM        # 64
PACKED_OUT = NUM_NETWORKS * OUTPUT_DIM           # 32

# Row layout of the single packed weight slab (all 128 lanes wide, bf16).
W1_ROWS = INPUT_DIM                              # 32
W2_ROWS = LANES                                  # 128 (block-diag (64,64) zero-padded)
W3_ROWS = LANES                                  # 128 (block-diag (64,32) zero-padded)
W1_OFF = 0
W2_OFF = W1_OFF + W1_ROWS                        # 32  (multiple of bf16 sublane tile 16)
W3_OFF = W2_OFF + W2_ROWS                        # 160 (multiple of bf16 sublane tile 16)
SLAB_ROWS = W3_OFF + W3_ROWS                     # 288


# ---- kernel -----------------------------------------------------------------
def _ensemble_kernel(x_ref, w_ref, b_ref, o_ref):
    """All networks fused: 3 lane-dense matmuls on one packed weight slab."""
    x = x_ref[...].astype(jnp.bfloat16)                              # cast in-kernel
    # Static, tile-aligned views into the packed weight slab (zero-cost).
    w1 = w_ref[W1_OFF:W1_OFF + W1_ROWS, :]                           # (32, 128)
    w2 = w_ref[W2_OFF:W2_OFF + W2_ROWS, :]                           # (128, 128)
    w3 = w_ref[W3_OFF:W3_OFF + W3_ROWS, :]                           # (128, 128)
    b = b_ref[...]                                                   # (3, 128) f32

    h = jnp.dot(x, w1, preferred_element_type=jnp.float32) + b[0:1, :]
    h = jnp.maximum(h, 0.0)                                          # ReLU (f32)
    # Dropout(rate=0) == identity
    h = jnp.dot(h.astype(jnp.bfloat16), w2,
                preferred_element_type=jnp.float32) + b[1:2, :]
    h = jnp.maximum(h, 0.0)                                          # ReLU (f32)
    o = jnp.dot(h.astype(jnp.bfloat16), w3,
                preferred_element_type=jnp.float32) + b[2:3, :]      # (B, 128)
    # Networks packed along lanes [n*16 : (n+1)*16]; write each directly.
    for n in range(NUM_NETWORKS):                                    # static 2-iter loop
        o_ref[n, :, :] = o[:, n * OUTPUT_DIM:(n + 1) * OUTPUT_DIM].astype(o_ref.dtype)


# ---- wrapper ----------------------------------------------------------------
def nnclass_forward(x, packed):
    """One pallas_call, 3 input DMAs, no wrapper-side XLA ops.

    Returns stacked (NUM_NETWORKS, B, OUTPUT_DIM) f32.
    """
    B = x.shape[0]
    vmem = pl.BlockSpec(memory_space=pltpu.MemorySpace.VMEM)
    return pl.pallas_call(
        _ensemble_kernel,
        out_shape=jax.ShapeDtypeStruct((NUM_NETWORKS, B, OUTPUT_DIM), jnp.float32),
        in_specs=[vmem, vmem, vmem],
        out_specs=vmem,
    )(x, packed["w"], packed["b"])


def nnclass_forward_list(x, packed):
    """Module-API-compatible view: list of per-network (B, D_out) outputs."""
    return list(nnclass_forward(x, packed))


# ---- params -----------------------------------------------------------------
def init_params(key):
    """He init, mode='fan_out' (matches NNClass.he_initializer); (in,out) layout."""
    keys = jax.random.split(key, 6 * NUM_NETWORKS)
    w1, b1, w2, b2, w3, b3 = [], [], [], [], [], []
    for i in range(NUM_NETWORKS):
        k = keys[6 * i:6 * (i + 1)]
        w1.append(jax.random.normal(k[0], (INPUT_DIM, HIDDEN_DIM), jnp.float32)
                  * jnp.sqrt(2.0 / HIDDEN_DIM))
        w2.append(jax.random.normal(k[1], (HIDDEN_DIM, HIDDEN_DIM), jnp.float32)
                  * jnp.sqrt(2.0 / HIDDEN_DIM))
        w3.append(jax.random.normal(k[2], (HIDDEN_DIM, OUTPUT_DIM), jnp.float32)
                  * jnp.sqrt(2.0 / OUTPUT_DIM))
        # small nonzero biases so the bias-add path is exercised
        b1.append(0.1 * jax.random.normal(k[3], (1, HIDDEN_DIM), jnp.float32))
        b2.append(0.1 * jax.random.normal(k[4], (1, HIDDEN_DIM), jnp.float32))
        b3.append(0.1 * jax.random.normal(k[5], (1, OUTPUT_DIM), jnp.float32))
    return {"w1": jnp.stack(w1), "b1": jnp.stack(b1),
            "w2": jnp.stack(w2), "b2": jnp.stack(b2),
            "w3": jnp.stack(w3), "b3": jnp.stack(b3)}


def _block_diag(blocks):
    rows = sum(b.shape[0] for b in blocks)
    cols = sum(b.shape[1] for b in blocks)
    out = jnp.zeros((rows, cols), blocks[0].dtype)
    r = c = 0
    for b in blocks:
        out = out.at[r:r + b.shape[0], c:c + b.shape[1]].set(b)
        r += b.shape[0]
        c += b.shape[1]
    return out


def _pad_lanes(a, lanes=LANES):
    return jnp.pad(a, ((0, 0), (0, lanes - a.shape[1])))


def pack_params(params):
    """Pack the ensemble into ONE bf16 weight slab and ONE f32 bias slab (done once)."""
    # Layer 1: per-network weights concatenated along output lanes.
    w1 = _pad_lanes(jnp.concatenate([params["w1"][i] for i in range(NUM_NETWORKS)],
                                    axis=1))                         # (32, 128)
    b1 = _pad_lanes(jnp.concatenate([params["b1"][i] for i in range(NUM_NETWORKS)],
                                    axis=1))                         # (1, 128)
    # Layer 2: block-diagonal, zero-padded to full 128x128 (zero rows/cols are inert).
    w2 = _block_diag([params["w2"][i] for i in range(NUM_NETWORKS)])  # (64, 64)
    w2 = jnp.pad(w2, ((0, W2_ROWS - w2.shape[0]), (0, LANES - w2.shape[1])))  # (128, 128)
    b2 = _pad_lanes(jnp.concatenate([params["b2"][i] for i in range(NUM_NETWORKS)],
                                    axis=1))                         # (1, 128)
    # Layer 3: block-diagonal (net n output in lanes n*16:(n+1)*16), padded to 128x128.
    w3 = _block_diag([params["w3"][i] for i in range(NUM_NETWORKS)])  # (64, 32)
    w3 = jnp.pad(w3, ((0, W3_ROWS - w3.shape[0]), (0, LANES - w3.shape[1])))  # (128, 128)
    b3 = _pad_lanes(jnp.concatenate([params["b3"][i] for i in range(NUM_NETWORKS)],
                                    axis=1))                         # (1, 128)

    w_slab = jnp.concatenate([w1, w2, w3], axis=0).astype(jnp.bfloat16)  # (288, 128)
    b_slab = jnp.concatenate([b1, b2, b3], axis=0).astype(jnp.float32)   # (3, 128)
    assert w_slab.shape == (SLAB_ROWS, LANES)
    return {"w": w_slab, "b": b_slab}


# ---- pure-JAX reference (f32) -----------------------------------------------
def reference_forward(x, params):
    outs = []
    for i in range(NUM_NETWORKS):
        h = jnp.maximum(x @ params["w1"][i] + params["b1"][i], 0.0)
        h = jnp.maximum(h @ params["w2"][i] + params["b2"][i], 0.0)
        outs.append(h @ params["w3"][i] + params["b3"][i])
    return outs


if __name__ == "__main__":
    key = jax.random.PRNGKey(0)
    kx, kp = jax.random.split(key)
    x = jax.random.normal(kx, (BATCH, INPUT_DIM), jnp.float32)
    params = init_params(kp)
    packed = pack_params(params)

    out = nnclass_forward(x, packed)                      # (N, B, D_out)
    out = jax.block_until_ready(out)

    refs = jnp.stack(reference_forward(x, params))        # f32 reference
    assert out.shape == (NUM_NETWORKS, BATCH, OUTPUT_DIM)
    # bf16 matmul operands with f32 accumulation -> loosened tolerance.
    assert jnp.allclose(out, refs, atol=5e-2, rtol=5e-2), \
        float(jnp.max(jnp.abs(out - refs)))

    # Module-style list of per-network outputs (built once, outside the kernel).
    outputs = nnclass_forward_list(x, packed)
    assert len(outputs) == NUM_NETWORKS and outputs[0].shape == (BATCH, OUTPUT_DIM)

    print("KERNEL_OK")
</pallas_src>

<mosaic_0001>
module attributes {stable_mosaic.version = 11 : i64} {
  func.func @_ensemble_kernel(%arg0: memref<8x32xf32, #tpu.memory_space<vmem>>, %arg1: memref<288x128xbf16, #tpu.memory_space<vmem>>, %arg2: memref<3x128xf32, #tpu.memory_space<vmem>>, %arg3: memref<2x8x16xf32, #tpu.memory_space<vmem>>) attributes {dimension_semantics = [], scalar_prefetch = 0 : i64, scratch_operands = 0 : i64, tpu.core_type = #tpu.core_type<tc>} {
    %c0 = arith.constant 0 : index
    %c0_0 = arith.constant 0 : index
    %0 = vector.load %arg0[%c0, %c0_0] : memref<8x32xf32, #tpu.memory_space<vmem>>, vector<8x32xf32>
    %1 = arith.truncf %0 : vector<8x32xf32> to vector<8x32xbf16>
    %c0_1 = arith.constant 0 : index
    %c0_2 = arith.constant 0 : index
    %2 = vector.load %arg1[%c0_1, %c0_2] : memref<288x128xbf16, #tpu.memory_space<vmem>>, vector<32x128xbf16>
    %c32 = arith.constant 32 : index
    %c0_3 = arith.constant 0 : index
    %3 = vector.load %arg1[%c32, %c0_3] : memref<288x128xbf16, #tpu.memory_space<vmem>>, vector<128x128xbf16>
    %c160 = arith.constant 160 : index
    %c0_4 = arith.constant 0 : index
    %4 = vector.load %arg1[%c160, %c0_4] : memref<288x128xbf16, #tpu.memory_space<vmem>>, vector<128x128xbf16>
    %c0_5 = arith.constant 0 : index
    %c0_6 = arith.constant 0 : index
    %5 = vector.load %arg2[%c0_5, %c0_6] : memref<3x128xf32, #tpu.memory_space<vmem>>, vector<3x128xf32>
    %cst = arith.constant dense<0.000000e+00> : vector<8x128xf32>
    %6 = tpu.matmul %1, %2, %cst {dimension_numbers = #tpu.dot_dimension_numbers<[1], [0], [0], [1], [0, 0, 1, 1], [], []>} : vector<8x32xbf16>, vector<32x128xbf16>, vector<8x128xf32> -> vector<8x128xf32>
    %7 = vector.extract_strided_slice %5 {offsets = [0, 0], sizes = [1, 128], strides = [1, 1]} : vector<3x128xf32> to vector<1x128xf32>
    %8 = vector.broadcast %7 : vector<1x128xf32> to vector<8x128xf32>
    %9 = arith.addf %6, %8 : vector<8x128xf32>
    %cst_7 = arith.constant 0.000000e+00 : f32
    %10 = vector.broadcast %cst_7 : f32 to vector<8x128xf32>
    %11 = arith.maximumf %9, %10 : vector<8x128xf32>
    %12 = arith.truncf %11 : vector<8x128xf32> to vector<8x128xbf16>
    %cst_8 = arith.constant dense<0.000000e+00> : vector<8x128xf32>
    %13 = tpu.matmul %12, %3, %cst_8 {dimension_numbers = #tpu.dot_dimension_numbers<[1], [0], [0], [1], [0, 0, 1, 1], [], []>} : vector<8x128xbf16>, vector<128x128xbf16>, vector<8x128xf32> -> vector<8x128xf32>
    %14 = vector.extract_strided_slice %5 {offsets = [1, 0], sizes = [1, 128], strides = [1, 1]} : vector<3x128xf32> to vector<1x128xf32>
    %15 = vector.broadcast %14 : vector<1x128xf32> to vector<8x128xf32>
    %16 = arith.addf %13, %15 : vector<8x128xf32>
    %cst_9 = arith.constant 0.000000e+00 : f32
    %17 = vector.broadcast %cst_9 : f32 to vector<8x128xf32>
    %18 = arith.maximumf %16, %17 : vector<8x128xf32>
    %19 = arith.truncf %18 : vector<8x128xf32> to vector<8x128xbf16>
    %cst_10 = arith.constant dense<0.000000e+00> : vector<8x128xf32>
    %20 = tpu.matmul %19, %4, %cst_10 {dimension_numbers = #tpu.dot_dimension_numbers<[1], [0], [0], [1], [0, 0, 1, 1], [], []>} : vector<8x128xbf16>, vector<128x128xbf16>, vector<8x128xf32> -> vector<8x128xf32>
    %21 = vector.extract_strided_slice %5 {offsets = [2, 0], sizes = [1, 128], strides = [1, 1]} : vector<3x128xf32> to vector<1x128xf32>
    %22 = vector.broadcast %21 : vector<1x128xf32> to vector<8x128xf32>
    %23 = arith.addf %20, %22 : vector<8x128xf32>
    %24 = vector.extract_strided_slice %23 {offsets = [0, 0], sizes = [8, 16], strides = [1, 1]} : vector<8x128xf32> to vector<8x16xf32>
    %c0_11 = arith.constant 0 : index
    %c0_12 = arith.constant 0 : index
    %c0_13 = arith.constant 0 : index
    %25 = vector.load %arg3[%c0_11, %c0_12, %c0_13] : memref<2x8x16xf32, #tpu.memory_space<vmem>>, vector<1x8x16xf32>
    %26 = vector.shape_cast %25 : vector<1x8x16xf32> to vector<8x16xf32>
    %27 = vector.shape_cast %24 : vector<8x16xf32> to vector<1x8x16xf32>
    tpu.vector_store %arg3[%c0_11, %c0_12, %c0_13], %27 {strides = array<i32>} : memref<2x8x16xf32, #tpu.memory_space<vmem>>, vector<1x8x16xf32>,
    %28 = vector.extract_strided_slice %23 {offsets = [0, 16], sizes = [8, 16], strides = [1, 1]} : vector<8x128xf32> to vector<8x16xf32>
    %c1 = arith.constant 1 : index
    %c0_14 = arith.constant 0 : index
    %c0_15 = arith.constant 0 : index
    %29 = vector.load %arg3[%c1, %c0_14, %c0_15] : memref<2x8x16xf32, #tpu.memory_space<vmem>>, vector<1x8x16xf32>
    %30 = vector.shape_cast %29 : vector<1x8x16xf32> to vector<8x16xf32>
    %31 = vector.shape_cast %28 : vector<8x16xf32> to vector<1x8x16xf32>
    tpu.vector_store %arg3[%c1, %c0_14, %c0_15], %31 {strides = array<i32>} : memref<2x8x16xf32, #tpu.memory_space<vmem>>, vector<1x8x16xf32>,
    return
  }
}

</mosaic_0001>

<llo_original>
// kernel: tpu_custom_call.1
$region0: #{tpu_custom_call.1}
  #allocation0 [shape = 'u32[]', space=smem, size = 0x4, offset = 0x4, fixed_abs, tag = 'smem constant byte address 0x4 - core index']
  #allocation1 [shape = 'u32[144,128]{1,0:T(1,128)}', space=vmem, size = 0x12000, scoped, tag = 'internal scratch']
  %s0 = inlined_call_operand.hbm [shape: f32[8,32], index: 0, kind: input, shape index: {}]
  %s1 = inlined_call_operand.hbm [shape: bf16[288,128], index: 1, kind: input, shape index: {}]
  %s2 = inlined_call_operand.hbm [shape: f32[3,128], index: 2, kind: input, shape index: {}]
  %s3 = inlined_call_operand.hbm [shape: f32[2,8,16], index: 3, kind: output, shape index: {}]
  %s4 = sld [smem:[#allocation0]]
  $region34: #{tpu_custom_call.1} parent=0
    _
  %s6 = ssub.s32 1, %s4
  %s7 = scalar_select 0, %s6, %s4
  $region1: #{tpu_custom_call.1} parent=0
    #allocation2 [shape = 'u8[4096]{0}', space=vmem, size = 0x1000, scoped, tag = 'input window, operand 0, single buffered']
    #allocation3 [shape = 's32[1]{0}', space=sflag, size = 0x4, scoped, tag = 'scoped memory for tpu_custom_call.1']
    #allocation4 [shape = 's32[1]{0}', space=sflag, size = 0x4, scoped, tag = 'scoped memory for tpu_custom_call.1']
    #allocation5 [shape = 'u8[73728]{0}', space=vmem, size = 0x12000, scoped, tag = 'input window, operand 1, single buffered']
    #allocation6 [shape = 's32[1]{0}', space=sflag, size = 0x4, scoped, tag = 'scoped memory for tpu_custom_call.1']
    #allocation7 [shape = 'u8[2048]{0}', space=vmem, size = 0x800, scoped, tag = 'input window, operand 2, single buffered']
    #allocation8 [shape = 'u8[8192]{0}', space=vmem, size = 0x2000, scoped, tag = 'output window, operand 0, single buffered']
    %8 = vsyncpa [#allocation3], 0
    %9 = vsyncpa [#allocation6], 0
    %10 = vsyncpa [#allocation4], 0
    // Predicated region
    $region2: #{tpu_custom_call.1} parent=1 // pred_check
      _
    $region3: #{tpu_custom_call.1} parent=1 // pred_check_branch
      %12 = sbr.rel (0) target = $region5
    $region4: #{tpu_custom_call.1} parent=1 // pred_region
      %s14 = ssub.s32 128, 128
      %15 = vsyncadd [#allocation3], %s14
      %s17 = sshll.u32 [#allocation2], 4
      %s18 = int_to_ptr.vmem [resolvable:$true] %s17
      %20 = dma.hbm_to_vmem [thread:$0]  %s0, 128, %s18, [#allocation3]
    $region5: #{tpu_custom_call.1} parent=1 // pred_fallthru
      _
    // Predicated region
    $region6: #{tpu_custom_call.1} parent=1 // pred_check
      _
    $region7: #{tpu_custom_call.1} parent=1 // pred_check_branch
      %22 = sbr.rel (0) target = $region9
    $region8: #{tpu_custom_call.1} parent=1 // pred_region
      %s24 = ssub.s32 2304, 2304
      %25 = vsyncadd [#allocation6], %s24
      %s26 = sshll.u32 [#allocation5], 4
      %s27 = int_to_ptr.vmem [resolvable:$true] %s26
      %32 = dma.hbm_to_vmem [thread:$0]  %s1, 2304, %s27, [#allocation6], 64, 64, 4
    $region9: #{tpu_custom_call.1} parent=1 // pred_fallthru
      _
    // Predicated region
    $region10: #{tpu_custom_call.1} parent=1 // pred_check
      _
    $region11: #{tpu_custom_call.1} parent=1 // pred_check_branch
      %34 = sbr.rel (0) target = $region13
    $region12: #{tpu_custom_call.1} parent=1 // pred_region
      %s36 = ssub.s32 64, 64
      %37 = vsyncadd [#allocation6], %s36
      %s39 = sshll.u32 [#allocation7], 4
      %s40 = int_to_ptr.vmem [resolvable:$true] %s39
      %42 = dma.hbm_to_vmem [thread:$0]  %s2, 64, %s40, [#allocation6]
    $region13: #{tpu_custom_call.1} parent=1 // pred_fallthru
      _
    // Predicated region
    $region14: #{tpu_custom_call.1} parent=1 // pred_check
      _
    $region15: #{tpu_custom_call.1} parent=1 // pred_check_branch
      %44 = sbr.rel (0) target = $region17
    $region16: #{tpu_custom_call.1} parent=1 // pred_region
      %45 = dma.done [#allocation3], 128
    $region17: #{tpu_custom_call.1} parent=1 // pred_fallthru
      _
    // Predicated region
    $region18: #{tpu_custom_call.1} parent=1 // pred_check
      _
    $region19: #{tpu_custom_call.1} parent=1 // pred_check_branch
      %47 = sbr.rel (0) target = $region21
    $region20: #{tpu_custom_call.1} parent=1 // pred_region
      %48 = dma.done [#allocation6], 2304
    $region21: #{tpu_custom_call.1} parent=1 // pred_fallthru
      _
    // Predicated region
    $region22: #{tpu_custom_call.1} parent=1 // pred_check
      _
    $region23: #{tpu_custom_call.1} parent=1 // pred_check_branch
      %50 = sbr.rel (0) target = $region25
    $region24: #{tpu_custom_call.1} parent=1 // pred_region
      %51 = dma.done [#allocation6], 64
    $region25: #{tpu_custom_call.1} parent=1 // pred_fallthru
      _
    %v53 = vld [vmem:[#allocation2] sm:$0xff]
    %v54 = vpack.c.bf16 %v53, %v53
    %v55 = vld [vmem:[#allocation5] sm:$0xf]
    %v56 = vld [vmem:[#allocation5 + $0x4] sm:$0xf]
    %v57 = vld [vmem:[#allocation5 + $0x8] sm:$0xf]
    %v58 = vld [vmem:[#allocation5 + $0xc] sm:$0xf]
    %v59 = vld [vmem:[#allocation5 + $0x10] sm:$0xf]
    %v60 = vld [vmem:[#allocation5 + $0x14] sm:$0xf]
    %v61 = vld [vmem:[#allocation5 + $0x18] sm:$0xf]
    %v62 = vld [vmem:[#allocation5 + $0x1c] sm:$0xf]
    %v63 = vld [vmem:[#allocation5 + $0x20] sm:$0xf]
    %v64 = vld [vmem:[#allocation5 + $0x24] sm:$0xf]
    %v65 = vld [vmem:[#allocation5 + $0x28] sm:$0xf]
    %v66 = vld [vmem:[#allocation5 + $0x2c] sm:$0xf]
    %v67 = vld [vmem:[#allocation5 + $0x30] sm:$0xf]
    %v68 = vld [vmem:[#allocation5 + $0x34] sm:$0xf]
    %v69 = vld [vmem:[#allocation5 + $0x38] sm:$0xf]
    %v70 = vld [vmem:[#allocation5 + $0x3c] sm:$0xf]
    %v71 = vld [vmem:[#allocation5 + $0x40] sm:$0xf]
    %v72 = vld [vmem:[#allocation5 + $0x44] sm:$0xf]
    %v73 = vld [vmem:[#allocation5 + $0x48] sm:$0xf]
    %v74 = vld [vmem:[#allocation5 + $0x4c] sm:$0xf]
    %v75 = vld [vmem:[#allocation5 + $0x50] sm:$0xf]
    %v76 = vld [vmem:[#allocation5 + $0x54] sm:$0xf]
    %v77 = vld [vmem:[#allocation5 + $0x58] sm:$0xf]
    %v78 = vld [vmem:[#allocation5 + $0x5c] sm:$0xf]
    %v79 = vld [vmem:[#allocation5 + $0x60] sm:$0xf]
    %v80 = vld [vmem:[#allocation5 + $0x64] sm:$0xf]
    %v81 = vld [vmem:[#allocation5 + $0x68] sm:$0xf]
    %v82 = vld [vmem:[#allocation5 + $0x6c] sm:$0xf]
    %v83 = vld [vmem:[#allocation5 + $0x70] sm:$0xf]
    %v84 = vld [vmem:[#allocation5 + $0x74] sm:$0xf]
    %v85 = vld [vmem:[#allocation5 + $0x78] sm:$0xf]
    %v86 = vld [vmem:[#allocation5 + $0x7c] sm:$0xf]
    %v87 = vld [vmem:[#allocation5 + $0x80] sm:$0xf]
    %v88 = vld [vmem:[#allocation5 + $0x84] sm:$0xf]
    %v89 = vld [vmem:[#allocation5 + $0x88] sm:$0xf]
    %v90 = vld [vmem:[#allocation5 + $0x8c] sm:$0xf]
    %v91 = vld [vmem:[#allocation7] sm:$0x7]
    %v92 = vlaneseq
    %v93 = vshrl.u32 %v92, 7
    %v94 = vsub.s32 0, %v93
    %v95 = vrot.slane %v91, %v94
    %v100 = vunpack.c.l.b16 %v55
    %v101 = vunpack.c.l.b16 %v56
    %v102 = vunpack.c.l.b16 %v57
    %v103 = vunpack.c.l.b16 %v58
    %v104 = vpack.c.b16 %v101, %v100
    %v105 = vpack.c.b16 %v103, %v102
    %vm108 = vcmask 261120
    %v110 = vsel %vm108, %v54, 0
    %112 = vmatprep.subr.bf16.mxu0 0
    %113 = vmatpush1.bf16.msra.mxu0 0
    %114 = vmatprep.subr.bf16.mxu0 0
    %115 = vmatpush1.bf16.msra.mxu0 0
    %116 = vmatprep.subr.bf16.mxu0 0
    %117 = vmatpush1.bf16.msra.mxu0 0
    %118 = vmatprep.subr.bf16.mxu0 0
    %119 = vmatpush1.bf16.msra.mxu0 0
    %120 = vmatprep.subr.bf16.mxu0 0
    %121 = vmatpush1.bf16.msra.mxu0 0
    %122 = vmatprep.subr.bf16.mxu0 0
    %123 = vmatpush1.bf16.msra.mxu0 0
    %124 = vmatprep.subr.bf16.mxu0 0
    %125 = vmatpush1.bf16.msra.mxu0 %v105
    %126 = vmatprep.subr.bf16.mxu0 0
    %127 = vmatpush1.bf16.msra.mxu0 %v104
    %128 = vmatprep.subr.bf16.mxu0 0
    %129 = vmatpush2.bf16.msra.mxu0 0
    %130 = vmatprep.subr.bf16.mxu0 0
    %131 = vmatpush2.bf16.msra.mxu0 0
    %132 = vmatprep.subr.bf16.mxu0 0
    %133 = vmatpush2.bf16.msra.mxu0 0
    %134 = vmatprep.subr.bf16.mxu0 0
    %135 = vmatpush2.bf16.msra.mxu0 0
    %136 = vmatprep.subr.bf16.mxu0 0
    %137 = vmatpush2.bf16.msra.mxu0 0
    %138 = vmatprep.subr.bf16.mxu0 0
    %139 = vmatpush2.bf16.msra.mxu0 0
    %140 = vmatprep.subr.bf16.mxu0 0
    %141 = vmatpush2.bf16.msra.mxu0 0
    %142 = vmatprep.subr.bf16.mxu0 0
    %143 = vmatpush2.bf16.msra.mxu0 0
    %144 = vmatprep.mubr.bf16.mxu0 0
    %145 = vmatmul.mubr.bf16.gmra.mxu0 %v110
    %v146 = vpop.f32.mrf.mxu0
    %v147 = vadd.f32 %v95, %v146
    %v148 = vpop.f32.mrf.mxu0
    %v149 = vpop.f32.mrf.mxu0
    %v150 = vpop.f32.mrf.mxu0
    %151 = vdwg.mxu0
    %v152 = vmax.f32 %v147, 0.0
    %v153 = vpack.c.bf16 %v152, %v152
    %v154 = vlaneseq
    %v155 = vshrl.u32 %v154, 7
    %v156 = vsub.s32 1, %v155
    %v157 = vrot.slane %v91, %v156
    %v174 = vunpack.c.l.b16 %v59
    %v175 = vunpack.c.l.b16 %v60
    %v176 = vunpack.c.l.b16 %v61
    %v177 = vunpack.c.l.b16 %v62
    %v178 = vunpack.c.l.b16 %v63
    %v179 = vunpack.c.l.b16 %v64
    %v180 = vunpack.c.l.b16 %v65
    %v181 = vunpack.c.l.b16 %v66
    %v182 = vunpack.c.l.b16 %v67
    %v183 = vunpack.c.l.b16 %v68
    %v184 = vunpack.c.l.b16 %v69
    %v185 = vunpack.c.l.b16 %v70
    %v186 = vunpack.c.l.b16 %v71
    %v187 = vunpack.c.l.b16 %v72
    %v188 = vunpack.c.l.b16 %v73
    %v189 = vunpack.c.l.b16 %v74
    %v190 = vpack.c.b16 %v175, %v174
    %v191 = vpack.c.b16 %v177, %v176
    %v192 = vpack.c.b16 %v179, %v178
    %v193 = vpack.c.b16 %v181, %v180
    %v194 = vpack.c.b16 %v183, %v182
    %v195 = vpack.c.b16 %v185, %v184
    %v196 = vpack.c.b16 %v187, %v186
    %v197 = vpack.c.b16 %v189, %v188
    %206 = vmatprep.subr.bf16.mxu0 0
    %207 = vmatpush1.bf16.msra.mxu0 %v197
    %208 = vmatprep.subr.bf16.mxu0 0
    %209 = vmatpush1.bf16.msra.mxu0 %v196
    %210 = vmatprep.subr.bf16.mxu0 0
    %211 = vmatpush1.bf16.msra.mxu0 %v195
    %212 = vmatprep.subr.bf16.mxu0 0
    %213 = vmatpush1.bf16.msra.mxu0 %v194
    %214 = vmatprep.subr.bf16.mxu0 0
    %215 = vmatpush1.bf16.msra.mxu0 %v193
    %216 = vmatprep.subr.bf16.mxu0 0
    %217 = vmatpush1.bf16.msra.mxu0 %v192
    %218 = vmatprep.subr.bf16.mxu0 0
    %219 = vmatpush1.bf16.msra.mxu0 %v191
    %220 = vmatprep.subr.bf16.mxu0 0
    %221 = vmatpush1.bf16.msra.mxu0 %v190
    %222 = vmatprep.subr.bf16.mxu0 0
    %223 = vmatpush2.bf16.msra.mxu0 0
    %224 = vmatprep.subr.bf16.mxu0 0
    %225 = vmatpush2.bf16.msra.mxu0 0
    %226 = vmatprep.subr.bf16.mxu0 0
    %227 = vmatpush2.bf16.msra.mxu0 0
    %228 = vmatprep.subr.bf16.mxu0 0
    %229 = vmatpush2.bf16.msra.mxu0 0
    %230 = vmatprep.subr.bf16.mxu0 0
    %231 = vmatpush2.bf16.msra.mxu0 0
    %232 = vmatprep.subr.bf16.mxu0 0
    %233 = vmatpush2.bf16.msra.mxu0 0
    %234 = vmatprep.subr.bf16.mxu0 0
    %235 = vmatpush2.bf16.msra.mxu0 0
    %236 = vmatprep.subr.bf16.mxu0 0
    %237 = vmatpush2.bf16.msra.mxu0 0
    %238 = vmatprep.mubr.bf16.mxu0 0
    %239 = vmatmul.mubr.bf16.gmra.mxu0 %v153
    %v240 = vpop.f32.mrf.mxu0
    %v241 = vadd.f32 %v157, %v240
    %v242 = vpop.f32.mrf.mxu0
    %v243 = vpop.f32.mrf.mxu0
    %v244 = vpop.f32.mrf.mxu0
    %245 = vdwg.mxu0
    %v246 = vmax.f32 %v241, 0.0
    %v247 = vpack.c.bf16 %v246, %v246
    %v248 = vlaneseq
    %v249 = vshrl.u32 %v248, 7
    %v250 = vsub.s32 2, %v249
    %v251 = vrot.slane %v91, %v250
    %v268 = vunpack.c.l.b16 %v75
    %v269 = vunpack.c.l.b16 %v76
    %v270 = vunpack.c.l.b16 %v77
    %v271 = vunpack.c.l.b16 %v78
    %v272 = vunpack.c.l.b16 %v79
    %v273 = vunpack.c.l.b16 %v80
    %v274 = vunpack.c.l.b16 %v81
    %v275 = vunpack.c.l.b16 %v82
    %v276 = vunpack.c.l.b16 %v83
    %v277 = vunpack.c.l.b16 %v84
    %v278 = vunpack.c.l.b16 %v85
    %v279 = vunpack.c.l.b16 %v86
    %v280 = vunpack.c.l.b16 %v87
    %v281 = vunpack.c.l.b16 %v88
    %v282 = vunpack.c.l.b16 %v89
    %v283 = vunpack.c.l.b16 %v90
    %v284 = vpack.c.b16 %v269, %v268
    %v285 = vpack.c.b16 %v271, %v270
    %v286 = vpack.c.b16 %v273, %v272
    %v287 = vpack.c.b16 %v275, %v274
    %v288 = vpack.c.b16 %v277, %v276
    %v289 = vpack.c.b16 %v279, %v278
    %v290 = vpack.c.b16 %v281, %v280
    %v291 = vpack.c.b16 %v283, %v282
    %300 = vmatprep.subr.bf16.mxu0 0
    %301 = vmatpush1.bf16.msra.mxu0 %v291
    %302 = vmatprep.subr.bf16.mxu0 0
    %303 = vmatpush1.bf16.msra.mxu0 %v290
    %304 = vmatprep.subr.bf16.mxu0 0
    %305 = vmatpush1.bf16.msra.mxu0 %v289
    %306 = vmatprep.subr.bf16.mxu0 0
    %307 = vmatpush1.bf16.msra.mxu0 %v288
    %308 = vmatprep.subr.bf16.mxu0 0
    %309 = vmatpush1.bf16.msra.mxu0 %v287
    %310 = vmatprep.subr.bf16.mxu0 0
    %311 = vmatpush1.bf16.msra.mxu0 %v286
    %312 = vmatprep.subr.bf16.mxu0 0
    %313 = vmatpush1.bf16.msra.mxu0 %v285
    %314 = vmatprep.subr.bf16.mxu0 0
    %315 = vmatpush1.bf16.msra.mxu0 %v284
    %316 = vmatprep.subr.bf16.mxu0 0
    %317 = vmatpush2.bf16.msra.mxu0 0
    %318 = vmatprep.subr.bf16.mxu0 0
    %319 = vmatpush2.bf16.msra.mxu0 0
    %320 = vmatprep.subr.bf16.mxu0 0
    %321 = vmatpush2.bf16.msra.mxu0 0
    %322 = vmatprep.subr.bf16.mxu0 0
    %323 = vmatpush2.bf16.msra.mxu0 0
    %324 = vmatprep.subr.bf16.mxu0 0
    %325 = vmatpush2.bf16.msra.mxu0 0
    %326 = vmatprep.subr.bf16.mxu0 0
    %327 = vmatpush2.bf16.msra.mxu0 0
    %328 = vmatprep.subr.bf16.mxu0 0
    %329 = vmatpush2.bf16.msra.mxu0 0
    %330 = vmatprep.subr.bf16.mxu0 0
    %331 = vmatpush2.bf16.msra.mxu0 0
    %332 = vmatprep.mubr.bf16.mxu0 0
    %333 = vmatmul.mubr.bf16.gmra.mxu0 %v247
    %v334 = vpop.f32.mrf.mxu0
    %v335 = vadd.f32 %v251, %v334
    %v336 = vpop.f32.mrf.mxu0
    %v337 = vpop.f32.mrf.mxu0
    %v338 = vpop.f32.mrf.mxu0
    %339 = vdwg.mxu0
    %vm340 = vcmask 130048
    %341 = vst.msk [vmem:[#allocation8] sm:$0xff] %vm340, %v335
    %343 = vrot.lane.b32.xlu0 %v335, 112
    %v344 = vpop.permute.xlu0 %343
    %s346 = scalar_lea.vmem [#allocation8], 8
    %347 = vst.msk [vmem:[%s346] sm:$0xff] %vm340, %v344
    // Predicated region
    $region26: #{tpu_custom_call.1} parent=1 // pred_check
      _
    $region27: #{tpu_custom_call.1} parent=1 // pred_check_branch
      %349 = sbr.rel (0) target = $region29
    $region28: #{tpu_custom_call.1} parent=1 // pred_region
      %s351 = ssub.s32 256, 256
      %352 = vsyncadd [#allocation4], %s351
      %s353 = sshll.u32 [#allocation8], 4
      %s354 = int_to_ptr.vmem [resolvable:$true] %s353
      %359 = dma.vmem_to_hbm [thread:$0]  %s354, 256, %s3, [#allocation4], 128, 128, 8
    $region29: #{tpu_custom_call.1} parent=1 // pred_fallthru
      _
    // Predicated region
    $region30: #{tpu_custom_call.1} parent=1 // pred_check
      _
    $region31: #{tpu_custom_call.1} parent=1 // pred_check_branch
      %361 = sbr.rel (0) target = $region33
    $region32: #{tpu_custom_call.1} parent=1 // pred_region
      %362 = dma.done [#allocation4], 256
    $region33: #{tpu_custom_call.1} parent=1 // pred_fallthru
      _
    %363 = vsyncpa [#allocation3], 1
    %364 = vsyncpa [#allocation6], 1
    %365 = vsyncpa [#allocation4], 1

</llo_original>
